<compile_context>
chip_gen: v7x
topology: tpu7x:2x2x1
jax: 0.10.0
libtpu: 0.0.40
codegen_flags: <defaults>
</compile_context>

<pallas_src>
import jax
import jax.numpy as jnp
from jax.experimental import pallas as pl
from jax.experimental.pallas import tpu as pltpu


def _round_up(v, m):
    return (v + m - 1) // m * m


# ---------------- kernels ----------------

def _dw_conv3x1_kernel_3d(w_ref, x_ref, o_ref):
    # w_ref: (bc_blk, 3, 1); x_ref: (bc_blk, H, W); o_ref: (bc_blk, H-2, W)
    H_out = o_ref.shape[1]
    x0 = x_ref[:, 0:H_out, :]          # slice the Ref, then load (no full-block load)
    x1 = x_ref[:, 1:H_out + 1, :]
    x2 = x_ref[:, 2:H_out + 2, :]
    w = w_ref[...]                     # (bc_blk, 3, 1), broadcasts over (H_out, W)
    o_ref[...] = x0 * w[:, 0:1, :] + x1 * w[:, 1:2, :] + x2 * w[:, 2:3, :]


def _make_dw_conv3x1_kernel_flat(W, H_out):
    # Lane-dense path for W % 128 != 0: (H, W) flattened into the lane axis.
    HoW = H_out * W

    def kernel(w_ref, x_ref, o_ref):
        # w_ref: (bc_blk, 3); x_ref: (bc_blk, H*W); o_ref: (bc_blk, (H-2)*W)
        w = w_ref[...]
        o_ref[...] = (x_ref[:, 0:HoW] * w[:, 0:1]
                      + x_ref[:, W:W + HoW] * w[:, 1:2]
                      + x_ref[:, 2 * W:2 * W + HoW] * w[:, 2:3])

    return kernel


# ---------------- sizing helpers ----------------

def _vmem_budget():
    """(per-block target bytes, vmem_limit cap) chosen per TPU generation."""
    cap_bytes = 64 << 20                      # conservative default (v7x: 64 MiB/TC)
    try:
        info = pltpu.get_tpu_info()
        cap_bytes = int(getattr(info, "vmem_capacity_bytes", cap_bytes)) or cap_bytes
    except Exception:
        pass
    if cap_bytes >= (100 << 20):              # v5e / v6e: 128 MiB VMEM
        return 20 << 20, 96 << 20
    return 12 << 20, 52 << 20                 # v7x: 64 MiB VMEM -> leave headroom


def _pick_bc_block(BC, block_bytes_fn, target_bytes, need_mult8):
    """Largest divisor of BC whose padded (in+out+weight) block fits target_bytes,
    preferring an even grid of >= 2 steps (v7x megacore balance).
    `need_mult8` applies only when bc is the second-to-last block dim (2-D path)."""
    if need_mult8:
        valid = [d for d in range(1, BC + 1)
                 if BC % d == 0 and (d % 8 == 0 or d == BC)]
    else:
        valid = [d for d in range(1, BC + 1) if BC % d == 0]
    fitting = [d for d in valid if block_bytes_fn(d) <= target_bytes]
    if not fitting:
        # TODO(synk): BC prime / no fitting divisor -> single oversized block; could
        # additionally tile H (with a 2-row halo) if such shapes ever show up.
        return min(valid)
    even_multi = [d for d in fitting if (BC // d) >= 2 and (BC // d) % 2 == 0]
    if even_multi:
        return max(even_multi)
    multi = [d for d in fitting if (BC // d) >= 2]
    if multi:
        return max(multi)
    return max(fitting)


# ---------------- wrapper ----------------

def depthwise_conv_3x1(x, weight):
    """x: (B, C, H, W) f32, weight: (C, 1, 3, 1) f32 -> (B, C, H-2, W) f32."""
    B, C, H, W = x.shape
    H_out = H - 2
    BC = B * C
    itemsize = jnp.dtype(x.dtype).itemsize

    # Tiny weight prep: fuse [C,1,3,1] -> [C,3], replicate per batch (BC,3). No W
    # broadcast here — the kernel broadcasts the 3 taps (hidden under the DMA).
    w_bc = jnp.broadcast_to(weight.reshape(C, 3)[None], (B, C, 3)).reshape(BC, 3)
    w_bc = w_bc.astype(x.dtype)

    target_bytes, vmem_cap = _vmem_budget()
    lane_dense = (W % 128 == 0)

    if lane_dense:
        # 3-D path: (bc, H, W); last two block dims equal full array dims -> any bc_blk.
        x_in = x.reshape(BC, H, W)
        w_in = w_bc.reshape(BC, 3, 1)

        def blk_bytes(d):  # padded in + out + weight bytes for a bc-block of d planes
            return d * ((_round_up(H, 8) + _round_up(H_out, 8)) * _round_up(W, 128)
                        + 8 * 128) * itemsize

        bc_blk = _pick_bc_block(BC, blk_bytes, target_bytes, need_mult8=False)
        grid = (BC // bc_blk,)
        kernel = _dw_conv3x1_kernel_3d
        in_specs = [pl.BlockSpec((bc_blk, 3, 1), lambda i: (i, 0, 0)),
                    pl.BlockSpec((bc_blk, H, W), lambda i: (i, 0, 0))]
        out_specs = pl.BlockSpec((bc_blk, H_out, W), lambda i: (i, 0, 0))
        out_shape = jax.ShapeDtypeStruct((BC, H_out, W), x.dtype)
    else:
        # 2-D lane-dense path: flatten (H, W) into the lane axis; taps are lane-offset
        # slices at 0, W, 2W. bc is now the second-to-last dim -> multiple of 8 or BC.
        x_in = x.reshape(BC, H * W)
        w_in = w_bc

        def blk_bytes(d):
            dp = _round_up(d, 8)
            return dp * (_round_up(H * W, 128) + _round_up(H_out * W, 128)
                         + 128) * itemsize

        bc_blk = _pick_bc_block(BC, blk_bytes, target_bytes, need_mult8=True)
        grid = (BC // bc_blk,)
        kernel = _make_dw_conv3x1_kernel_flat(W, H_out)
        in_specs = [pl.BlockSpec((bc_blk, 3), lambda i: (i, 0)),
                    pl.BlockSpec((bc_blk, H * W), lambda i: (i, 0))]
        out_specs = pl.BlockSpec((bc_blk, H_out * W), lambda i: (i, 0))
        out_shape = jax.ShapeDtypeStruct((BC, H_out * W), x.dtype)

    # Honest, padding-aware VMEM limit (double-buffered blocks + slack), capped per gen.
    needed = 2 * blk_bytes(bc_blk) + (2 << 20)
    vmem_limit = int(min(max(needed, 32 << 20), vmem_cap))

    cost = pl.CostEstimate(
        flops=5 * BC * H_out * W,
        transcendentals=0,
        bytes_accessed=(BC * H * W + BC * H_out * W + BC * 3) * itemsize)

    out_flat = pl.pallas_call(
        kernel,
        out_shape=out_shape,
        grid_spec=pltpu.PrefetchScalarGridSpec(
            num_scalar_prefetch=0,
            grid=grid,
            in_specs=in_specs,
            out_specs=out_specs),
        compiler_params=pltpu.CompilerParams(
            dimension_semantics=("parallel",),
            vmem_limit_bytes=vmem_limit),
        cost_estimate=cost,
    )(w_in, x_in)

    return out_flat.reshape(B, C, H_out, W)


# ---------------- reference & demo ----------------

def _reference(x, weight):
    B, C, H, W = x.shape
    wf = weight.reshape(C, 3)
    return (x[:, :, 0:H - 2, :] * wf[None, :, 0, None, None]
            + x[:, :, 1:H - 1, :] * wf[None, :, 1, None, None]
            + x[:, :, 2:H, :] * wf[None, :, 2, None, None])


if __name__ == "__main__":
    key = jax.random.PRNGKey(0)

    # Test 1: module-consistent small shape (in_channels=3), narrow-W flattened path.
    B, C, H, W = 2, 3, 16, 16
    k1, k2, key = jax.random.split(key, 3)
    x = jax.random.normal(k1, (B, C, H, W), dtype=jnp.float32)
    weight = jax.random.normal(k2, (C, 1, 3, 1), dtype=jnp.float32) * 0.1
    out = jax.block_until_ready(depthwise_conv_3x1(x, weight))
    assert out.shape == (B, C, H - 2, W), out.shape
    assert jnp.allclose(out, _reference(x, weight), atol=1e-5, rtol=1e-5), "mismatch (test 1)"

    # Test 2: lane-dense 3-D path (W multiple of 128), multi-block grid (2 steps).
    B, C, H, W = 2, 4, 16, 128
    k1, k2, key = jax.random.split(key, 3)
    x = jax.random.normal(k1, (B, C, H, W), dtype=jnp.float32)
    weight = jax.random.normal(k2, (C, 1, 3, 1), dtype=jnp.float32) * 0.1
    out = jax.block_until_ready(depthwise_conv_3x1(x, weight))
    assert out.shape == (B, C, H - 2, W), out.shape
    assert jnp.allclose(out, _reference(x, weight), atol=1e-5, rtol=1e-5), "mismatch (test 2)"

    print("KERNEL_OK")
</pallas_src>

<mosaic_0001>
module attributes {stable_mosaic.version = 11 : i64} {
  func.func @kernel(%arg0: i32, %arg1: memref<6x3xf32, #tpu.memory_space<vmem>>, %arg2: memref<6x256xf32, #tpu.memory_space<vmem>>, %arg3: memref<6x224xf32, #tpu.memory_space<vmem>>) attributes {dimension_semantics = [#tpu.dimension_semantics<parallel>], iteration_bounds = array<i64: 1>, scalar_prefetch = 0 : i64, scratch_operands = 0 : i64, tpu.core_type = #tpu.core_type<tc>, window_params = [{transform_indices = @transform_0, window_bounds = array<i64: 6, 3>}, {transform_indices = @transform_1, window_bounds = array<i64: 6, 256>}, {transform_indices = @transform_2, window_bounds = array<i64: 6, 224>}]} {
    %c0 = arith.constant 0 : index
    %c0_0 = arith.constant 0 : index
    %0 = vector.load %arg1[%c0, %c0_0] : memref<6x3xf32, #tpu.memory_space<vmem>>, vector<6x3xf32>
    %c0_1 = arith.constant 0 : index
    %c0_2 = arith.constant 0 : index
    %1 = vector.load %arg2[%c0_1, %c0_2] : memref<6x256xf32, #tpu.memory_space<vmem>>, vector<6x224xf32>
    %2 = vector.extract_strided_slice %0 {offsets = [0, 0], sizes = [6, 1], strides = [1, 1]} : vector<6x3xf32> to vector<6x1xf32>
    %3 = vector.broadcast %2 : vector<6x1xf32> to vector<6x224xf32>
    %4 = arith.mulf %1, %3 : vector<6x224xf32>
    %c0_3 = arith.constant 0 : index
    %c16 = arith.constant 16 : index
    %5 = vector.load %arg2[%c0_3, %c16] : memref<6x256xf32, #tpu.memory_space<vmem>>, vector<6x224xf32>
    %6 = vector.extract_strided_slice %0 {offsets = [0, 1], sizes = [6, 1], strides = [1, 1]} : vector<6x3xf32> to vector<6x1xf32>
    %7 = vector.broadcast %6 : vector<6x1xf32> to vector<6x224xf32>
    %8 = arith.mulf %5, %7 : vector<6x224xf32>
    %9 = arith.addf %4, %8 : vector<6x224xf32>
    %c0_4 = arith.constant 0 : index
    %c32 = arith.constant 32 : index
    %10 = vector.load %arg2[%c0_4, %c32] : memref<6x256xf32, #tpu.memory_space<vmem>>, vector<6x224xf32>
    %11 = vector.extract_strided_slice %0 {offsets = [0, 2], sizes = [6, 1], strides = [1, 1]} : vector<6x3xf32> to vector<6x1xf32>
    %12 = vector.broadcast %11 : vector<6x1xf32> to vector<6x224xf32>
    %13 = arith.mulf %10, %12 : vector<6x224xf32>
    %14 = arith.addf %9, %13 : vector<6x224xf32>
    %c0_5 = arith.constant 0 : index
    %c0_6 = arith.constant 0 : index
    %15 = vector.load %arg3[%c0_5, %c0_6] : memref<6x224xf32, #tpu.memory_space<vmem>>, vector<6x224xf32>
    tpu.vector_store %arg3[%c0_5, %c0_6], %14 {strides = array<i32>} : memref<6x224xf32, #tpu.memory_space<vmem>>, vector<6x224xf32>,
    return
  }
  func.func @transform_0(%arg0: i32) -> (i32, i32) {
    %c0_i32 = arith.constant 0 : i32
    %c0_i32_0 = arith.constant 0 : i32
    return %arg0, %c0_i32 : i32, i32
  }
  func.func @transform_1(%arg0: i32) -> (i32, i32) {
    %c0_i32 = arith.constant 0 : i32
    %c0_i32_0 = arith.constant 0 : i32
    return %arg0, %c0_i32 : i32, i32
  }
  func.func @transform_2(%arg0: i32) -> (i32, i32) {
    %c0_i32 = arith.constant 0 : i32
    %c0_i32_0 = arith.constant 0 : i32
    return %arg0, %c0_i32 : i32, i32
  }
}

</mosaic_0001>

<llo_original>
// kernel: tpu_custom_call.1
$region0: #{tpu_custom_call.1}
  #allocation0 [shape = 'u32[]', space=smem, size = 0x4, offset = 0x4, fixed_abs, tag = 'smem constant byte address 0x4 - core index']
  #allocation1 [shape = 'u32[144,128]{1,0:T(1,128)}', space=vmem, size = 0x12000, scoped, tag = 'internal scratch']
  %s0 = inlined_call_operand.vmem [shape: f32[6,3], index: 0, kind: input, shape index: {}]
  %s1 = inlined_call_operand.hbm [shape: f32[6,256], index: 1, kind: input, shape index: {}]
  %s2 = inlined_call_operand.hbm [shape: f32[6,224], index: 2, kind: output, shape index: {}]
  %s3 = sld [smem:[#allocation0]]
  $region22: #{tpu_custom_call.1} parent=0
    _
  %s5 = ssub.s32 1, %s3
  %s6 = scalar_select 0, %s5, %s3
  $region1: #{tpu_custom_call.1} parent=0
    #allocation2 [shape = 'u8[8192]{0}', space=vmem, size = 0x2000, scoped, tag = 'input window, operand 1, single buffered']
    #allocation3 [shape = 's32[1]{0}', space=sflag, size = 0x4, scoped, tag = 'scoped memory for tpu_custom_call.1']
    #allocation4 [shape = 's32[1]{0}', space=sflag, size = 0x4, scoped, tag = 'scoped memory for tpu_custom_call.1']
    #allocation5 [shape = 'u8[8192]{0}', space=vmem, size = 0x2000, scoped, tag = 'output window, operand 0, single buffered']
    %7 = vsyncpa [#allocation3], 0
    %8 = vsyncpa [#allocation4], 0
    // Predicated region
    $region2: #{tpu_custom_call.1} parent=1 // pred_check
      _
    $region3: #{tpu_custom_call.1} parent=1 // pred_check_branch
      %10 = sbr.rel (0) target = $region5
    $region4: #{tpu_custom_call.1} parent=1 // pred_region
      _
    $region5: #{tpu_custom_call.1} parent=1 // pred_fallthru
      _
    // Predicated region
    $region6: #{tpu_custom_call.1} parent=1 // pred_check
      _
    $region7: #{tpu_custom_call.1} parent=1 // pred_check_branch
      %12 = sbr.rel (0) target = $region9
    $region8: #{tpu_custom_call.1} parent=1 // pred_region
      %s14 = ssub.s32 256, 256
      %15 = vsyncadd [#allocation3], %s14
      %s17 = sshll.u32 [#allocation2], 4
      %s18 = int_to_ptr.vmem [resolvable:$true] %s17
      %20 = dma.hbm_to_vmem [thread:$0]  %s1, 256, %s18, [#allocation3]
    $region9: #{tpu_custom_call.1} parent=1 // pred_fallthru
      _
    // Predicated region
    $region10: #{tpu_custom_call.1} parent=1 // pred_check
      _
    $region11: #{tpu_custom_call.1} parent=1 // pred_check_branch
      %22 = sbr.rel (0) target = $region13
    $region12: #{tpu_custom_call.1} parent=1 // pred_region
      %23 = dma.done [#allocation3], 256
    $region13: #{tpu_custom_call.1} parent=1 // pred_fallthru
      _
    %v24 = vld [vmem:[%s0] sm:$0x3f]
    %v25 = vld [vmem:[#allocation2] sm:$0x3f]
    %v26 = vld [vmem:[#allocation2 + $0x8] sm:$0x3f]
    %28 = vset.pattern.permute.xlu0 0
    %29 = vperm.xlu0 %28, %v24
    %v30 = vpop.permute.xlu0 %29
    %v32 = vmul.f32 %v25, %v30
    %v33 = vmul.f32 %v26, %v30
    %34 = vset.pattern.permute.xlu0 1
    %35 = vperm.xlu0 %34, %v24
    %v36 = vpop.permute.xlu0 %35
    %v38 = vmul.f32 %v25, %v36
    %v39 = vmul.f32 %v26, %v36
    %42 = vrot.lane.b32.xlu0 %v38, 112
    %v43 = vpop.permute.xlu0 %42
    %44 = vrot.lane.b32.xlu0 %v39, 112
    %v45 = vpop.permute.xlu0 %44
    %vm46 = vcmask 916480
    %v47 = vsel %vm46, %v43, %v45
    %v50 = vadd.f32 %v32, %v47
    %v51 = vadd.f32 %v33, %v45
    %52 = vset.pattern.permute.xlu0 2
    %53 = vperm.xlu0 %52, %v24
    %v54 = vpop.permute.xlu0 %53
    %v56 = vmul.f32 %v25, %v54
    %v57 = vmul.f32 %v26, %v54
    %60 = vrot.lane.b32.xlu0 %v56, 96
    %v61 = vpop.permute.xlu0 %60
    %62 = vrot.lane.b32.xlu0 %v57, 96
    %v63 = vpop.permute.xlu0 %62
    %vm64 = vcmask 785408
    %v65 = vsel %vm64, %v61, %v63
    %v68 = vadd.f32 %v50, %v65
    %v69 = vadd.f32 %v51, %v63
    %70 = vst [vmem:[#allocation5] sm:$0x3f] %v68
    %vm71 = vcmask 783360
    %72 = vst.msk [vmem:[#allocation5 + $0x8] sm:$0x3f] %vm71, %v69
    // Predicated region
    $region14: #{tpu_custom_call.1} parent=1 // pred_check
      _
    $region15: #{tpu_custom_call.1} parent=1 // pred_check_branch
      %74 = sbr.rel (0) target = $region17
    $region16: #{tpu_custom_call.1} parent=1 // pred_region
      %s76 = ssub.s32 256, 256
      %77 = vsyncadd [#allocation4], %s76
      %s79 = sshll.u32 [#allocation5], 4
      %s80 = int_to_ptr.vmem [resolvable:$true] %s79
      %82 = dma.vmem_to_hbm [thread:$0]  %s80, 256, %s2, [#allocation4]
    $region17: #{tpu_custom_call.1} parent=1 // pred_fallthru
      _
    // Predicated region
    $region18: #{tpu_custom_call.1} parent=1 // pred_check
      _
    $region19: #{tpu_custom_call.1} parent=1 // pred_check_branch
      %84 = sbr.rel (0) target = $region21
    $region20: #{tpu_custom_call.1} parent=1 // pred_region
      %85 = dma.done [#allocation4], 256
    $region21: #{tpu_custom_call.1} parent=1 // pred_fallthru
      _
    %86 = vsyncpa [#allocation3], 1
    %87 = vsyncpa [#allocation4], 1

</llo_original>
